<compile_context>
chip_gen: v5e
topology: v5e:2x2
jax: 0.10.0
libtpu: 0.0.40
codegen_flags: <defaults>
</compile_context>

<pallas_src>
import jax
import jax.numpy as jnp
from jax.experimental import pallas as pl
from jax.experimental.pallas import tpu as pltpu

_LANE = 128  # TPU lane width


def _round_up(n, m):
    return ((n + m - 1) // m) * m


def _value_net_kernel(x_ref, w1_ref, b1_ref, w2_ref, b2_ref, w3_ref, b3_ref,
                      o_ref):
    # fc1 + relu (dropout = identity in eval mode).  x is cast to bf16 on the
    # VPU here (kernel is MXU/DMA bound, so the cast is free) instead of the
    # wrapper materializing a second copy of x in HBM.
    x = x_ref[...].astype(jnp.bfloat16)
    h1 = jnp.dot(x, w1_ref[...], preferred_element_type=jnp.float32)
    h1 = jnp.maximum(h1 + b1_ref[...], 0.0)

    # fc2 + relu (dropout = identity in eval mode).
    h2 = jnp.dot(h1.astype(jnp.bfloat16), w2_ref[...],
                 preferred_element_type=jnp.float32)
    h2 = jnp.maximum(h2 + b2_ref[...], 0.0)

    # fc3: output width is 1, so instead of a degenerate N=1 MXU matmul and a
    # lane-sparse (tb, 1) store, do a VPU multiply + XLU lane reduction and
    # write the batch along the LANE axis as a dense (1, tb) row.  (The lane
    # reduce + sublane->lane relayout hides under the fc2 matmul.)
    w3 = w3_ref[...].astype(jnp.float32)                  # (1, h_p)
    red = jnp.sum(h2 * w3, axis=-1)                       # (tb,)
    o_ref[...] = (red[None, :] + b3_ref[0, 0]).astype(o_ref.dtype)


def prepare_params(params):
    """One-time pad + bf16 cast of the weights (hoisted out of the per-call
    path so forward calls do not re-write padded copies to HBM)."""
    in_size, H = params["w1"].shape
    # v6e/v7x MXU is 2x256^2: prefer a 256 multiple for H > 128 (128-rounding
    # is already exact on v5e; for H <= 128 the kernel is overhead-bound).
    h_p = _round_up(H, 256) if H > 128 else _round_up(H, _LANE)

    def pad2(a, r, c):
        return jnp.pad(a, ((0, r - a.shape[0]), (0, c - a.shape[1])))

    return {
        "w1": pad2(params["w1"], in_size, h_p).astype(jnp.bfloat16),
        "b1": pad2(params["b1"], 1, h_p).astype(jnp.float32),
        "w2": pad2(params["w2"], h_p, h_p).astype(jnp.bfloat16),
        "b2": pad2(params["b2"], 1, h_p).astype(jnp.float32),
        "w3": pad2(params["w3"].T, 1, h_p).astype(jnp.bfloat16),  # row (1,h_p)
        "b3": params["b3"].astype(jnp.float32),                   # (1,1) SMEM
    }


def _vmem_limit_bytes(est):
    """~0.8 * physical VMEM (≈102 MiB on v5e/v6e, ≈51 MiB on v7x) so Mosaic
    keeps headroom for internal scratch; conservative 48 MiB fallback."""
    try:
        cap = int(0.8 * pltpu.get_tpu_info().vmem_capacity_bytes)
    except Exception:
        cap = 48 * 1024 * 1024
    return int(min(cap, max(8 * 1024 * 1024, 2 * est)))


def value_network_forward(x, prepared, *, tb=1024):
    """Forward pass of ValueNetwork.

    x:        (B, input_size), f32 or bf16 (cast to bf16 inside the kernel).
    prepared: output of prepare_params() (padded bf16 weights, f32 biases).
    Returns (B, 1) f32.
    """
    B, in_size = x.shape
    assert prepared["w1"].shape[0] == in_size
    h_p = prepared["w1"].shape[1]

    # --- batch tile selection -----------------------------------------------
    tb = max(_LANE, _round_up(tb, _LANE))
    b128 = _round_up(B, _LANE)
    if b128 >= 2 * _LANE:
        # Guarantee >= 2 grid steps so ("parallel",) can shard across the two
        # TensorCores on v7x (no-op on single-TC v5e/v6e).
        tb = min(tb, max(_LANE, (b128 // 2) // _LANE * _LANE))
    # Keep the two (tb, h_p) f32 intermediates within a modest VMEM budget.
    act_budget = 16 * 1024 * 1024
    tb = min(tb, max(_LANE, act_budget // (2 * h_p * 4) // _LANE * _LANE))
    tb = min(tb, b128)
    b_pad = _round_up(B, tb)
    n_tiles = b_pad // tb

    # Pad the batch axis only when needed (aligned callers pay no extra HBM
    # copy); the feature axis is never padded — the BlockSpec uses its full
    # extent and the MXU handles the short K dimension.
    x_in = x if b_pad == B else jnp.pad(x, ((0, b_pad - B), (0, 0)))

    # --- VMEM budget & cost hint ---------------------------------------------
    est = (2 * tb * in_size * x_in.dtype.itemsize   # x tile (double-buffered)
           + 2 * tb * 4                              # out row (double-buffered)
           + (in_size * h_p + h_p * h_p + h_p) * 2   # bf16 weights (resident)
           + 2 * h_p * 4                             # f32 biases
           + 2 * tb * h_p * 4)                       # f32 h1/h2 intermediates
    vmem_limit = _vmem_limit_bytes(est)

    flops = 2 * b_pad * (in_size * h_p + h_p * h_p + h_p)
    bytes_accessed = (x_in.size * x_in.dtype.itemsize
                      + (in_size * h_p + h_p * h_p + h_p) * 2
                      + (2 * h_p + 1) * 4
                      + b_pad * 4)
    cost = pl.CostEstimate(flops=flops, transcendentals=0,
                           bytes_accessed=bytes_accessed)

    def build(single_buffer_consts):
        const = lambda i: (0, 0)
        pm = ({"pipeline_mode": pl.Buffered(1)} if single_buffer_consts else {})
        in_specs = [
            pl.BlockSpec((tb, in_size), lambda i: (i, 0)),      # x batch tile
            pl.BlockSpec((in_size, h_p), const, **pm),          # w1
            pl.BlockSpec((1, h_p), const, **pm),                 # b1
            pl.BlockSpec((h_p, h_p), const, **pm),               # w2
            pl.BlockSpec((1, h_p), const, **pm),                 # b2
            pl.BlockSpec((1, h_p), const, **pm),                 # w3 (row form)
            pl.BlockSpec(memory_space=pltpu.MemorySpace.SMEM),   # b3 scalar
        ]
        return pl.pallas_call(
            _value_net_kernel,
            out_shape=jax.ShapeDtypeStruct((1, b_pad), jnp.float32),
            grid_spec=pltpu.PrefetchScalarGridSpec(
                num_scalar_prefetch=0,
                grid=(n_tiles,),
                in_specs=in_specs,
                out_specs=pl.BlockSpec((1, tb), lambda i: (0, i)),  # lane-dense
            ),
            compiler_params=pltpu.CompilerParams(
                dimension_semantics=("parallel",),
                vmem_limit_bytes=vmem_limit,
            ),
            cost_estimate=cost,
        )

    args = (x_in, prepared["w1"], prepared["b1"], prepared["w2"],
            prepared["b2"], prepared["w3"], prepared["b3"])
    try:
        # Constant-index weights/biases single-buffered (halves their VMEM).
        out = build(True)(*args)
    except Exception:
        # pipeline_mode=pl.Buffered(1) unsupported on this jax build: fall back
        # to default double-buffering (correct, just more VMEM).
        out = build(False)(*args)

    return out[0, :B].reshape(B, 1)


def init_params(key, input_size, hidden_size):
    """Deterministic init matching the PyTorch module:
       xavier_uniform_ for weights, default Linear bias init for biases."""
    ks = jax.random.split(key, 6)

    def xavier(k, fan_in, fan_out):
        bound = jnp.sqrt(6.0 / (fan_in + fan_out))
        # stored as (in, out) -> equivalent to PyTorch weight.T
        return jax.random.uniform(k, (fan_in, fan_out), jnp.float32,
                                  -bound, bound)

    def bias(k, fan_in, fan_out):
        bound = 1.0 / jnp.sqrt(float(fan_in))
        return jax.random.uniform(k, (1, fan_out), jnp.float32, -bound, bound)

    return {
        "w1": xavier(ks[0], input_size, hidden_size),
        "b1": bias(ks[1], input_size, hidden_size),
        "w2": xavier(ks[2], hidden_size, hidden_size),
        "b2": bias(ks[3], hidden_size, hidden_size),
        "w3": xavier(ks[4], hidden_size, 1),
        "b3": bias(ks[5], hidden_size, 1),
    }


if __name__ == "__main__":
    key = jax.random.PRNGKey(0)
    k_x, k_p = jax.random.split(key)

    batch, input_size, hidden_size = 8, 16, 32
    x = jax.random.normal(k_x, (batch, input_size), jnp.float32)
    params = init_params(k_p, input_size, hidden_size)
    prepared = prepare_params(params)   # one-time: pad + bf16-cast weights

    out = value_network_forward(x, prepared, tb=256)
    jax.block_until_ready(out)
    assert out.shape == (batch, 1)

    f32, bf16 = jnp.float32, jnp.bfloat16

    # Reference emulating the kernel numerics (bf16 matmul operands, f32
    # accumulation / bias / ReLU, f32 reduction for fc3).
    w1b = params["w1"].astype(bf16)
    w2b = params["w2"].astype(bf16)
    w3f = params["w3"].astype(bf16).astype(f32)        # (H, 1)
    h1r = jnp.maximum(
        jnp.dot(x.astype(bf16), w1b, preferred_element_type=f32)
        + params["b1"], 0.0)
    h2r = jnp.maximum(
        jnp.dot(h1r.astype(bf16), w2b, preferred_element_type=f32)
        + params["b2"], 0.0)
    ref_bf16 = jnp.sum(h2r * w3f.T, axis=-1, keepdims=True) + params["b3"]
    assert jnp.allclose(out, ref_bf16, atol=1e-3, rtol=1e-3)

    # Loose sanity check against the pure-f32 forward pass (bf16 quantization
    # error only).
    hf = jnp.maximum(x @ params["w1"] + params["b1"], 0.0)
    hf = jnp.maximum(hf @ params["w2"] + params["b2"], 0.0)
    ref_f32 = hf @ params["w3"] + params["b3"]
    assert jnp.allclose(out, ref_f32, atol=1e-1, rtol=1e-1)

    print("KERNEL_OK")
</pallas_src>

<mosaic_0001>
module attributes {stable_mosaic.version = 11 : i64} {
  func.func @_value_net_kernel(%arg0: i32, %arg1: memref<128x16xf32, #tpu.memory_space<vmem>>, %arg2: memref<16x128xbf16, #tpu.memory_space<vmem>>, %arg3: memref<1x128xf32, #tpu.memory_space<vmem>>, %arg4: memref<128x128xbf16, #tpu.memory_space<vmem>>, %arg5: memref<1x128xf32, #tpu.memory_space<vmem>>, %arg6: memref<1x128xbf16, #tpu.memory_space<vmem>>, %arg7: memref<1x1xf32, #tpu.memory_space<smem>>, %arg8: memref<1x128xf32, #tpu.memory_space<vmem>>) attributes {dimension_semantics = [#tpu.dimension_semantics<parallel>], iteration_bounds = array<i64: 1>, scalar_prefetch = 0 : i64, scratch_operands = 0 : i64, tpu.core_type = #tpu.core_type<tc>, window_params = [{transform_indices = @transform_0, window_bounds = array<i64: 128, 16>}, {pipeline_mode = #tpu.pipeline_mode<synchronous>, transform_indices = @transform_1, window_bounds = array<i64: 16, 128>}, {pipeline_mode = #tpu.pipeline_mode<synchronous>, transform_indices = @transform_2, window_bounds = array<i64: 1, 128>}, {pipeline_mode = #tpu.pipeline_mode<synchronous>, transform_indices = @transform_3, window_bounds = array<i64: 128, 128>}, {pipeline_mode = #tpu.pipeline_mode<synchronous>, transform_indices = @transform_4, window_bounds = array<i64: 1, 128>}, {pipeline_mode = #tpu.pipeline_mode<synchronous>, transform_indices = @transform_5, window_bounds = array<i64: 1, 128>}, {transform_indices = @transform_6, window_bounds = array<i64: 1, 1>}, {transform_indices = @transform_7, window_bounds = array<i64: 1, 128>}]} {
    %c0 = arith.constant 0 : index
    %c0_0 = arith.constant 0 : index
    %0 = vector.load %arg1[%c0, %c0_0] : memref<128x16xf32, #tpu.memory_space<vmem>>, vector<128x16xf32>
    %1 = arith.truncf %0 : vector<128x16xf32> to vector<128x16xbf16>
    %c0_1 = arith.constant 0 : index
    %c0_2 = arith.constant 0 : index
    %2 = vector.load %arg2[%c0_1, %c0_2] : memref<16x128xbf16, #tpu.memory_space<vmem>>, vector<16x128xbf16>
    %cst = arith.constant dense<0.000000e+00> : vector<128x128xf32>
    %3 = tpu.matmul %1, %2, %cst {dimension_numbers = #tpu.dot_dimension_numbers<[1], [0], [0], [1], [0, 0, 1, 1], [], []>} : vector<128x16xbf16>, vector<16x128xbf16>, vector<128x128xf32> -> vector<128x128xf32>
    %c0_3 = arith.constant 0 : index
    %c0_4 = arith.constant 0 : index
    %4 = vector.load %arg3[%c0_3, %c0_4] : memref<1x128xf32, #tpu.memory_space<vmem>>, vector<1x128xf32>
    %5 = vector.broadcast %4 : vector<1x128xf32> to vector<128x128xf32>
    %6 = arith.addf %3, %5 : vector<128x128xf32>
    %cst_5 = arith.constant 0.000000e+00 : f32
    %7 = vector.broadcast %cst_5 : f32 to vector<128x128xf32>
    %8 = arith.maximumf %6, %7 : vector<128x128xf32>
    %9 = arith.truncf %8 : vector<128x128xf32> to vector<128x128xbf16>
    %c0_6 = arith.constant 0 : index
    %c0_7 = arith.constant 0 : index
    %10 = vector.load %arg4[%c0_6, %c0_7] : memref<128x128xbf16, #tpu.memory_space<vmem>>, vector<128x128xbf16>
    %cst_8 = arith.constant dense<0.000000e+00> : vector<128x128xf32>
    %11 = tpu.matmul %9, %10, %cst_8 {dimension_numbers = #tpu.dot_dimension_numbers<[1], [0], [0], [1], [0, 0, 1, 1], [], []>} : vector<128x128xbf16>, vector<128x128xbf16>, vector<128x128xf32> -> vector<128x128xf32>
    %c0_9 = arith.constant 0 : index
    %c0_10 = arith.constant 0 : index
    %12 = vector.load %arg5[%c0_9, %c0_10] : memref<1x128xf32, #tpu.memory_space<vmem>>, vector<1x128xf32>
    %13 = vector.broadcast %12 : vector<1x128xf32> to vector<128x128xf32>
    %14 = arith.addf %11, %13 : vector<128x128xf32>
    %cst_11 = arith.constant 0.000000e+00 : f32
    %15 = vector.broadcast %cst_11 : f32 to vector<128x128xf32>
    %16 = arith.maximumf %14, %15 : vector<128x128xf32>
    %c0_12 = arith.constant 0 : index
    %c0_13 = arith.constant 0 : index
    %17 = vector.load %arg6[%c0_12, %c0_13] : memref<1x128xbf16, #tpu.memory_space<vmem>>, vector<1x128xbf16>
    %18 = arith.extf %17 : vector<1x128xbf16> to vector<1x128xf32>
    %19 = vector.broadcast %18 : vector<1x128xf32> to vector<128x128xf32>
    %20 = arith.mulf %16, %19 : vector<128x128xf32>
    %cst_14 = arith.constant dense<0.000000e+00> : vector<128xf32>
    %21 = vector.multi_reduction <add>, %20, %cst_14 [1] : vector<128x128xf32> to vector<128xf32>
    %22 = vector.shape_cast %21 : vector<128xf32> to vector<1x128xf32>
    %c0_15 = arith.constant 0 : index
    %c0_16 = arith.constant 0 : index
    %23 = memref.load %arg7[%c0_15, %c0_16] : memref<1x1xf32, #tpu.memory_space<smem>>
    %24 = vector.broadcast %23 : f32 to vector<1x128xf32>
    %25 = arith.addf %22, %24 : vector<1x128xf32>
    %c0_17 = arith.constant 0 : index
    %c0_18 = arith.constant 0 : index
    %26 = vector.load %arg8[%c0_17, %c0_18] : memref<1x128xf32, #tpu.memory_space<vmem>>, vector<1x128xf32>
    tpu.vector_store %arg8[%c0_17, %c0_18], %25 {strides = array<i32>} : memref<1x128xf32, #tpu.memory_space<vmem>>, vector<1x128xf32>,
    return
  }
  func.func @transform_0(%arg0: i32) -> (i32, i32) {
    %c0_i32 = arith.constant 0 : i32
    %c0_i32_0 = arith.constant 0 : i32
    return %arg0, %c0_i32 : i32, i32
  }
  func.func @transform_1(%arg0: i32) -> (i32, i32) {
    %c0_i32 = arith.constant 0 : i32
    %c0_i32_0 = arith.constant 0 : i32
    %c0_i32_1 = arith.constant 0 : i32
    return %c0_i32, %c0_i32_0 : i32, i32
  }
  func.func @transform_2(%arg0: i32) -> (i32, i32) {
    %c0_i32 = arith.constant 0 : i32
    %c0_i32_0 = arith.constant 0 : i32
    %c0_i32_1 = arith.constant 0 : i32
    return %c0_i32, %c0_i32_0 : i32, i32
  }
  func.func @transform_3(%arg0: i32) -> (i32, i32) {
    %c0_i32 = arith.constant 0 : i32
    %c0_i32_0 = arith.constant 0 : i32
    %c0_i32_1 = arith.constant 0 : i32
    return %c0_i32, %c0_i32_0 : i32, i32
  }
  func.func @transform_4(%arg0: i32) -> (i32, i32) {
    %c0_i32 = arith.constant 0 : i32
    %c0_i32_0 = arith.constant 0 : i32
    %c0_i32_1 = arith.constant 0 : i32
    return %c0_i32, %c0_i32_0 : i32, i32
  }
  func.func @transform_5(%arg0: i32) -> (i32, i32) {
    %c0_i32 = arith.constant 0 : i32
    %c0_i32_0 = arith.constant 0 : i32
    %c0_i32_1 = arith.constant 0 : i32
    return %c0_i32, %c0_i32_0 : i32, i32
  }
  func.func @transform_6(%arg0: i32) -> (i32, i32) {
    %c0_i32 = arith.constant 0 : i32
    %c0_i32_0 = arith.constant 0 : i32
    %c0_i32_1 = arith.constant 0 : i32
    return %c0_i32, %c0_i32_0 : i32, i32
  }
  func.func @transform_7(%arg0: i32) -> (i32, i32) {
    %c0_i32 = arith.constant 0 : i32
    %c0_i32_0 = arith.constant 0 : i32
    return %c0_i32, %arg0 : i32, i32
  }
}

module attributes {stable_mosaic.version = 11 : i64} {
  func.func @_value_net_kernel(%arg0: i32, %arg1: memref<128x16xf32, #tpu.memory_space<vmem>>, %arg2: memref<16x128xbf16, #tpu.memory_space<vmem>>, %arg3: memref<1x128xf32, #tpu.memory_space<vmem>>, %arg4: memref<128x128xbf16, #tpu.memory_space<vmem>>, %arg5: memref<1x128xf32, #tpu.memory_space<vmem>>, %arg6: memref<1x128xbf16, #tpu.memory_space<vmem>>, %arg7: memref<1x1xf32, #tpu.memory_space<smem>>, %arg8: memref<1x128xf32, #tpu.memory_space<vmem>>) attributes {dimension_semantics = [#tpu.dimension_semantics<parallel>], iteration_bounds = array<i64: 1>, scalar_prefetch = 0 : i64, scratch_operands = 0 : i64, tpu.core_type = #tpu.core_type<tc>, window_params = [{transform_indices = @transform_0, window_bounds = array<i64: 128, 16>}, {pipeline_mode = #tpu.pipeline_mode<synchronous>, transform_indices = @transform_1, window_bounds = array<i64: 16, 128>}, {pipeline_mode = #tpu.pipeline_mode<synchronous>, transform_indices = @transform_2, window_bounds = array<i64: 1, 128>}, {pipeline_mode = #tpu.pipeline_mode<synchronous>, transform_indices = @transform_3, window_bounds = array<i64: 128, 128>}, {pipeline_mode = #tpu.pipeline_mode<synchronous>, transform_indices = @transform_4, window_bounds = array<i64: 1, 128>}, {pipeline_mode = #tpu.pipeline_mode<synchronous>, transform_indices = @transform_5, window_bounds = array<i64: 1, 128>}, {transform_indices = @transform_6, window_bounds = array<i64: 1, 1>}, {transform_indices = @transform_7, window_bounds = array<i64: 1, 128>}]} {
    %c0 = arith.constant 0 : index
    %c0_0 = arith.constant 0 : index
    %0 = vector.load %arg1[%c0, %c0_0] : memref<128x16xf32, #tpu.memory_space<vmem>>, vector<128x16xf32>
    %1 = arith.truncf %0 : vector<128x16xf32> to vector<128x16xbf16>
    %c0_1 = arith.constant 0 : index
    %c0_2 = arith.constant 0 : index
    %2 = vector.load %arg2[%c0_1, %c0_2] : memref<16x128xbf16, #tpu.memory_space<vmem>>, vector<16x128xbf16>
    %cst = arith.constant dense<0.000000e+00> : vector<128x128xf32>
    %3 = tpu.matmul %1, %2, %cst {dimension_numbers = #tpu.dot_dimension_numbers<[1], [0], [0], [1], [0, 0, 1, 1], [], []>} : vector<128x16xbf16>, vector<16x128xbf16>, vector<128x128xf32> -> vector<128x128xf32>
    %c0_3 = arith.constant 0 : index
    %c0_4 = arith.constant 0 : index
    %4 = vector.load %arg3[%c0_3, %c0_4] : memref<1x128xf32, #tpu.memory_space<vmem>>, vector<1x128xf32>
    %5 = vector.broadcast %4 : vector<1x128xf32> to vector<128x128xf32>
    %6 = arith.addf %3, %5 : vector<128x128xf32>
    %cst_5 = arith.constant 0.000000e+00 : f32
    %7 = vector.broadcast %cst_5 : f32 to vector<128x128xf32>
    %8 = arith.maximumf %6, %7 : vector<128x128xf32>
    %9 = arith.truncf %8 : vector<128x128xf32> to vector<128x128xbf16>
    %c0_6 = arith.constant 0 : index
    %c0_7 = arith.constant 0 : index
    %10 = vector.load %arg4[%c0_6, %c0_7] : memref<128x128xbf16, #tpu.memory_space<vmem>>, vector<128x128xbf16>
    %cst_8 = arith.constant dense<0.000000e+00> : vector<128x128xf32>
    %11 = tpu.matmul %9, %10, %cst_8 {dimension_numbers = #tpu.dot_dimension_numbers<[1], [0], [0], [1], [0, 0, 1, 1], [], []>} : vector<128x128xbf16>, vector<128x128xbf16>, vector<128x128xf32> -> vector<128x128xf32>
    %c0_9 = arith.constant 0 : index
    %c0_10 = arith.constant 0 : index
    %12 = vector.load %arg5[%c0_9, %c0_10] : memref<1x128xf32, #tpu.memory_space<vmem>>, vector<1x128xf32>
    %13 = vector.broadcast %12 : vector<1x128xf32> to vector<128x128xf32>
    %14 = arith.addf %11, %13 : vector<128x128xf32>
    %cst_11 = arith.constant 0.000000e+00 : f32
    %15 = vector.broadcast %cst_11 : f32 to vector<128x128xf32>
    %16 = arith.maximumf %14, %15 : vector<128x128xf32>
    %c0_12 = arith.constant 0 : index
    %c0_13 = arith.constant 0 : index
    %17 = vector.load %arg6[%c0_12, %c0_13] : memref<1x128xbf16, #tpu.memory_space<vmem>>, vector<1x128xbf16>
    %18 = arith.extf %17 : vector<1x128xbf16> to vector<1x128xf32>
    %19 = vector.broadcast %18 : vector<1x128xf32> to vector<128x128xf32>
    %20 = arith.mulf %16, %19 : vector<128x128xf32>
    %cst_14 = arith.constant dense<0.000000e+00> : vector<128xf32>
    %21 = vector.multi_reduction <add>, %20, %cst_14 [1] : vector<128x128xf32> to vector<128xf32>
    %22 = vector.shape_cast %21 : vector<128xf32> to vector<1x128xf32>
    %c0_15 = arith.constant 0 : index
    %c0_16 = arith.constant 0 : index
    %23 = memref.load %arg7[%c0_15, %c0_16] : memref<1x1xf32, #tpu.memory_space<smem>>
    %24 = vector.broadcast %23 : f32 to vector<1x128xf32>
    %25 = arith.addf %22, %24 : vector<1x128xf32>
    %c0_17 = arith.constant 0 : index
    %c0_18 = arith.constant 0 : index
    %26 = vector.load %arg8[%c0_17, %c0_18] : memref<1x128xf32, #tpu.memory_space<vmem>>, vector<1x128xf32>
    tpu.vector_store %arg8[%c0_17, %c0_18], %25 {strides = array<i32>} : memref<1x128xf32, #tpu.memory_space<vmem>>, vector<1x128xf32>,
    return
  }
  func.func @transform_0(%arg0: i32) -> (i32, i32) {
    %c0_i32 = arith.constant 0 : i32
    %c0_i32_0 = arith.constant 0 : i32
    return %arg0, %c0_i32 : i32, i32
  }
  func.func @transform_1(%arg0: i32) -> (i32, i32) {
    %c0_i32 = arith.constant 0 : i32
    %c0_i32_0 = arith.constant 0 : i32
    %c0_i32_1 = arith.constant 0 : i32
    return %c0_i32, %c0_i32_0 : i32, i32
  }
  func.func @transform_2(%arg0: i32) -> (i32, i32) {
    %c0_i32 = arith.constant 0 : i32
    %c0_i32_0 = arith.constant 0 : i32
    %c0_i32_1 = arith.constant 0 : i32
    return %c0_i32, %c0_i32_0 : i32, i32
  }
  func.func @transform_3(%arg0: i32) -> (i32, i32) {
    %c0_i32 = arith.constant 0 : i32
    %c0_i32_0 = arith.constant 0 : i32
    %c0_i32_1 = arith.constant 0 : i32
    return %c0_i32, %c0_i32_0 : i32, i32
  }
  func.func @transform_4(%arg0: i32) -> (i32, i32) {
    %c0_i32 = arith.constant 0 : i32
    %c0_i32_0 = arith.constant 0 : i32
    %c0_i32_1 = arith.constant 0 : i32
    return %c0_i32, %c0_i32_0 : i32, i32
  }
  func.func @transform_5(%arg0: i32) -> (i32, i32) {
    %c0_i32 = arith.constant 0 : i32
    %c0_i32_0 = arith.constant 0 : i32
    %c0_i32_1 = arith.constant 0 : i32
    return %c0_i32, %c0_i32_0 : i32, i32
  }
  func.func @transform_6(%arg0: i32) -> (i32, i32) {
    %c0_i32 = arith.constant 0 : i32
    %c0_i32_0 = arith.constant 0 : i32
    %c0_i32_1 = arith.constant 0 : i32
    return %c0_i32, %c0_i32_0 : i32, i32
  }
  func.func @transform_7(%arg0: i32) -> (i32, i32) {
    %c0_i32 = arith.constant 0 : i32
    %c0_i32_0 = arith.constant 0 : i32
    return %c0_i32, %arg0 : i32, i32
  }
}

</mosaic_0001>

<llo_original>
// kernel: tpu_custom_call.1
$region0: #{tpu_custom_call.1}
  #allocation0 [shape = 'u32[]', space=smem, size = 0x4, offset = 0x4, fixed_abs, tag = 'smem constant byte address 0x4 - core index']
  #allocation1 [shape = 'u32[72,128]{1,0:T(1,128)}', space=vmem, size = 0x9000, scoped, tag = 'internal scratch']
  #allocation2 [shape = 'f32[1,1]{1,0:T(1,128)S(6)}', space=smem, size = 0x200, scoped, tag = 'scoped memory for tpu_custom_call.1']
  %s0 = inlined_call_operand.vmem [shape: f32[128,16], index: 0, kind: input, shape index: {}]
  %s1 = inlined_call_operand.vmem [shape: bf16[16,128], index: 1, kind: input, shape index: {}]
  %s2 = inlined_call_operand.vmem [shape: f32[1,128], index: 2, kind: input, shape index: {}]
  %s3 = inlined_call_operand.vmem [shape: bf16[128,128], index: 3, kind: input, shape index: {}]
  %s4 = inlined_call_operand.vmem [shape: f32[1,128], index: 4, kind: input, shape index: {}]
  %s5 = inlined_call_operand.vmem [shape: bf16[1,128], index: 5, kind: input, shape index: {}]
  %s6 = inlined_call_operand.<no memory space> [shape: f32[1,1], index: 6, kind: input, shape index: {}]
  %s7 = inlined_call_operand.hbm [shape: f32[1,128], index: 7, kind: output, shape index: {}]
  %s8 = sld [smem:[#allocation0]]
  $region38: #{tpu_custom_call.1} parent=0
    _
  %s10 = ssub.s32 1, %s8
  %s11 = scalar_select 0, %s10, %s8
  %12 = sst [smem:[#allocation2]] %s6
  $region1: #{tpu_custom_call.1} parent=0
    #allocation3 [shape = 'u8[512]{0}', space=vmem, size = 0x400, scoped, tag = 'output window, operand 0, single buffered']
    #allocation4 [shape = 's32[1]{0}', space=sflag, size = 0x4, scoped, tag = 'scoped memory for tpu_custom_call.1']
    %13 = vsyncpa [#allocation4], 0
    // Predicated region
    $region2: #{tpu_custom_call.1} parent=1 // pred_check
      _
    $region3: #{tpu_custom_call.1} parent=1 // pred_check_branch
      %15 = sbr.rel (0) target = $region5
    $region4: #{tpu_custom_call.1} parent=1 // pred_region
      _
    $region5: #{tpu_custom_call.1} parent=1 // pred_fallthru
      _
    // Predicated region
    $region6: #{tpu_custom_call.1} parent=1 // pred_check
      _
    $region7: #{tpu_custom_call.1} parent=1 // pred_check_branch
      %17 = sbr.rel (0) target = $region9
    $region8: #{tpu_custom_call.1} parent=1 // pred_region
      _
    $region9: #{tpu_custom_call.1} parent=1 // pred_fallthru
      _
    // Predicated region
    $region10: #{tpu_custom_call.1} parent=1 // pred_check
      _
    $region11: #{tpu_custom_call.1} parent=1 // pred_check_branch
      %19 = sbr.rel (0) target = $region13
    $region12: #{tpu_custom_call.1} parent=1 // pred_region
      _
    $region13: #{tpu_custom_call.1} parent=1 // pred_fallthru
      _
    // Predicated region
    $region14: #{tpu_custom_call.1} parent=1 // pred_check
      _
    $region15: #{tpu_custom_call.1} parent=1 // pred_check_branch
      %21 = sbr.rel (0) target = $region17
    $region16: #{tpu_custom_call.1} parent=1 // pred_region
      _
    $region17: #{tpu_custom_call.1} parent=1 // pred_fallthru
      _
    // Predicated region
    $region18: #{tpu_custom_call.1} parent=1 // pred_check
      _
    $region19: #{tpu_custom_call.1} parent=1 // pred_check_branch
      %23 = sbr.rel (0) target = $region21
    $region20: #{tpu_custom_call.1} parent=1 // pred_region
      _
    $region21: #{tpu_custom_call.1} parent=1 // pred_fallthru
      _
    // Predicated region
    $region22: #{tpu_custom_call.1} parent=1 // pred_check
      _
    $region23: #{tpu_custom_call.1} parent=1 // pred_check_branch
      %25 = sbr.rel (0) target = $region25
    $region24: #{tpu_custom_call.1} parent=1 // pred_region
      _
    $region25: #{tpu_custom_call.1} parent=1 // pred_fallthru
      _
    // Predicated region
    $region26: #{tpu_custom_call.1} parent=1 // pred_check
      _
    $region27: #{tpu_custom_call.1} parent=1 // pred_check_branch
      %27 = sbr.rel (0) target = $region29
    $region28: #{tpu_custom_call.1} parent=1 // pred_region
      _
    $region29: #{tpu_custom_call.1} parent=1 // pred_fallthru
      _
    %v29 = vld [vmem:[%s0] sm:$0xff]
    %v30 = vld [vmem:[%s0 + $0x8] sm:$0xff]
    %v31 = vld [vmem:[%s0 + $0x10] sm:$0xff]
    %v32 = vld [vmem:[%s0 + $0x18] sm:$0xff]
    %v33 = vld [vmem:[%s0 + $0x20] sm:$0xff]
    %v34 = vld [vmem:[%s0 + $0x28] sm:$0xff]
    %v35 = vld [vmem:[%s0 + $0x30] sm:$0xff]
    %v36 = vld [vmem:[%s0 + $0x38] sm:$0xff]
    %v37 = vld [vmem:[%s0 + $0x40] sm:$0xff]
    %v38 = vld [vmem:[%s0 + $0x48] sm:$0xff]
    %v39 = vld [vmem:[%s0 + $0x50] sm:$0xff]
    %v40 = vld [vmem:[%s0 + $0x58] sm:$0xff]
    %v41 = vld [vmem:[%s0 + $0x60] sm:$0xff]
    %v42 = vld [vmem:[%s0 + $0x68] sm:$0xff]
    %v43 = vld [vmem:[%s0 + $0x70] sm:$0xff]
    %v44 = vld [vmem:[%s0 + $0x78] sm:$0xff]
    %v45 = vpack.c.bf16 %v30, %v29
    %v46 = vpack.c.bf16 %v32, %v31
    %v47 = vpack.c.bf16 %v34, %v33
    %v48 = vpack.c.bf16 %v36, %v35
    %v49 = vpack.c.bf16 %v38, %v37
    %v50 = vpack.c.bf16 %v40, %v39
    %v51 = vpack.c.bf16 %v42, %v41
    %v52 = vpack.c.bf16 %v44, %v43
    %v53 = vld [vmem:[%s1] sm:$0xf]
    %v54 = vld [vmem:[%s1 + $0x4] sm:$0xf]
    %v55 = vld [vmem:[%s2] sm:$0x1]
    %v57 = vperm.slane %v55, 0
    %v61 = vunpack.c.l.b16 %v53
    %v62 = vunpack.c.l.b16 %v54
    %v63 = vpack.c.b16 %v62, %v61
    %vm65 = vcmask 130048
    %v67 = vsel %vm65, %v45, 0
    %v70 = vsel %vm65, %v46, 0
    %v73 = vsel %vm65, %v47, 0
    %v76 = vsel %vm65, %v48, 0
    %v79 = vsel %vm65, %v49, 0
    %v82 = vsel %vm65, %v50, 0
    %v85 = vsel %vm65, %v51, 0
    %v88 = vsel %vm65, %v52, 0
    %90 = vmatpush.bf16.msra.mxu0 0
    %91 = vmatpush.bf16.msra.mxu0 0
    %92 = vmatpush.bf16.msra.mxu0 0
    %93 = vmatpush.bf16.msra.mxu0 0
    %94 = vmatpush.bf16.msra.mxu0 0
    %95 = vmatpush.bf16.msra.mxu0 0
    %96 = vmatpush.bf16.msra.mxu0 0
    %97 = vmatpush.bf16.msra.mxu0 %v63
    %98 = vmatmul.bf16.gmra.mxu0 %v67
    %v99 = vpop.f32.mrf.mxu0
    %v100 = vadd.f32 %v57, %v99
    %v101 = vpop.f32.mrf.mxu0
    %v102 = vadd.f32 %v57, %v101
    %103 = vmatmul.bf16.gmra.mxu0 %v70
    %v104 = vpop.f32.mrf.mxu0
    %v105 = vadd.f32 %v57, %v104
    %v106 = vpop.f32.mrf.mxu0
    %v107 = vadd.f32 %v57, %v106
    %108 = vmatmul.bf16.gmra.mxu0 %v73
    %v109 = vpop.f32.mrf.mxu0
    %v110 = vadd.f32 %v57, %v109
    %v111 = vpop.f32.mrf.mxu0
    %v112 = vadd.f32 %v57, %v111
    %113 = vmatmul.bf16.gmra.mxu0 %v76
    %v114 = vpop.f32.mrf.mxu0
    %v115 = vadd.f32 %v57, %v114
    %v116 = vpop.f32.mrf.mxu0
    %v117 = vadd.f32 %v57, %v116
    %118 = vmatmul.bf16.gmra.mxu0 %v79
    %v119 = vpop.f32.mrf.mxu0
    %v120 = vadd.f32 %v57, %v119
    %v121 = vpop.f32.mrf.mxu0
    %v122 = vadd.f32 %v57, %v121
    %123 = vmatmul.bf16.gmra.mxu0 %v82
    %v124 = vpop.f32.mrf.mxu0
    %v125 = vadd.f32 %v57, %v124
    %v126 = vpop.f32.mrf.mxu0
    %v127 = vadd.f32 %v57, %v126
    %128 = vmatmul.bf16.gmra.mxu0 %v85
    %v129 = vpop.f32.mrf.mxu0
    %v130 = vadd.f32 %v57, %v129
    %v131 = vpop.f32.mrf.mxu0
    %v132 = vadd.f32 %v57, %v131
    %133 = vmatmul.bf16.gmra.mxu0 %v88
    %v134 = vpop.f32.mrf.mxu0
    %v135 = vadd.f32 %v57, %v134
    %v136 = vpop.f32.mrf.mxu0
    %v137 = vadd.f32 %v57, %v136
    %138 = vdwg.mxu0
    %v139 = vmax.f32 %v100, 0.0
    %v140 = vmax.f32 %v102, 0.0
    %v141 = vmax.f32 %v105, 0.0
    %v142 = vmax.f32 %v107, 0.0
    %v143 = vmax.f32 %v110, 0.0
    %v144 = vmax.f32 %v112, 0.0
    %v145 = vmax.f32 %v115, 0.0
    %v146 = vmax.f32 %v117, 0.0
    %v147 = vmax.f32 %v120, 0.0
    %v148 = vmax.f32 %v122, 0.0
    %v149 = vmax.f32 %v125, 0.0
    %v150 = vmax.f32 %v127, 0.0
    %v151 = vmax.f32 %v130, 0.0
    %v152 = vmax.f32 %v132, 0.0
    %v153 = vmax.f32 %v135, 0.0
    %v154 = vmax.f32 %v137, 0.0
    %v155 = vpack.c.bf16 %v140, %v139
    %v156 = vpack.c.bf16 %v142, %v141
    %v157 = vpack.c.bf16 %v144, %v143
    %v158 = vpack.c.bf16 %v146, %v145
    %v159 = vpack.c.bf16 %v148, %v147
    %v160 = vpack.c.bf16 %v150, %v149
    %v161 = vpack.c.bf16 %v152, %v151
    %v162 = vpack.c.bf16 %v154, %v153
    %v163 = vld [vmem:[%s3] sm:$0xf]
    %v164 = vld [vmem:[%s3 + $0x4] sm:$0xf]
    %v165 = vld [vmem:[%s3 + $0x8] sm:$0xf]
    %v166 = vld [vmem:[%s3 + $0xc] sm:$0xf]
    %v167 = vld [vmem:[%s3 + $0x10] sm:$0xf]
    %v168 = vld [vmem:[%s3 + $0x14] sm:$0xf]
    %v169 = vld [vmem:[%s3 + $0x18] sm:$0xf]
    %v170 = vld [vmem:[%s3 + $0x1c] sm:$0xf]
    %v171 = vld [vmem:[%s3 + $0x20] sm:$0xf]
    %v172 = vld [vmem:[%s3 + $0x24] sm:$0xf]
    %v173 = vld [vmem:[%s3 + $0x28] sm:$0xf]
    %v174 = vld [vmem:[%s3 + $0x2c] sm:$0xf]
    %v175 = vld [vmem:[%s3 + $0x30] sm:$0xf]
    %v176 = vld [vmem:[%s3 + $0x34] sm:$0xf]
    %v177 = vld [vmem:[%s3 + $0x38] sm:$0xf]
    %v178 = vld [vmem:[%s3 + $0x3c] sm:$0xf]
    %v179 = vld [vmem:[%s4] sm:$0x1]
    %v181 = vperm.slane %v179, 0
    %v199 = vunpack.c.l.b16 %v163
    %v200 = vunpack.c.l.b16 %v164
    %v201 = vunpack.c.l.b16 %v165
    %v202 = vunpack.c.l.b16 %v166
    %v203 = vunpack.c.l.b16 %v167
    %v204 = vunpack.c.l.b16 %v168
    %v205 = vunpack.c.l.b16 %v169
    %v206 = vunpack.c.l.b16 %v170
    %v207 = vunpack.c.l.b16 %v171
    %v208 = vunpack.c.l.b16 %v172
    %v209 = vunpack.c.l.b16 %v173
    %v210 = vunpack.c.l.b16 %v174
    %v211 = vunpack.c.l.b16 %v175
    %v212 = vunpack.c.l.b16 %v176
    %v213 = vunpack.c.l.b16 %v177
    %v214 = vunpack.c.l.b16 %v178
    %v215 = vpack.c.b16 %v200, %v199
    %v216 = vpack.c.b16 %v202, %v201
    %v217 = vpack.c.b16 %v204, %v203
    %v218 = vpack.c.b16 %v206, %v205
    %v219 = vpack.c.b16 %v208, %v207
    %v220 = vpack.c.b16 %v210, %v209
    %v221 = vpack.c.b16 %v212, %v211
    %v222 = vpack.c.b16 %v214, %v213
    %231 = vmatpush.bf16.msra.mxu0 %v222
    %232 = vmatpush.bf16.msra.mxu0 %v221
    %233 = vmatpush.bf16.msra.mxu0 %v220
    %234 = vmatpush.bf16.msra.mxu0 %v219
    %235 = vmatpush.bf16.msra.mxu0 %v218
    %236 = vmatpush.bf16.msra.mxu0 %v217
    %237 = vmatpush.bf16.msra.mxu0 %v216
    %238 = vmatpush.bf16.msra.mxu0 %v215
    %239 = vmatmul.bf16.gmra.mxu0 %v155
    %v240 = vpop.f32.mrf.mxu0
    %v241 = vadd.f32 %v181, %v240
    %v242 = vpop.f32.mrf.mxu0
    %v243 = vadd.f32 %v181, %v242
    %244 = vmatmul.bf16.gmra.mxu0 %v156
    %v245 = vpop.f32.mrf.mxu0
    %v246 = vadd.f32 %v181, %v245
    %v247 = vpop.f32.mrf.mxu0
    %v248 = vadd.f32 %v181, %v247
    %249 = vmatmul.bf16.gmra.mxu0 %v157
    %v250 = vpop.f32.mrf.mxu0
    %v251 = vadd.f32 %v181, %v250
    %v252 = vpop.f32.mrf.mxu0
    %v253 = vadd.f32 %v181, %v252
    %254 = vmatmul.bf16.gmra.mxu0 %v158
    %v255 = vpop.f32.mrf.mxu0
    %v256 = vadd.f32 %v181, %v255
    %v257 = vpop.f32.mrf.mxu0
    %v258 = vadd.f32 %v181, %v257
    %259 = vmatmul.bf16.gmra.mxu0 %v159
    %v260 = vpop.f32.mrf.mxu0
    %v261 = vadd.f32 %v181, %v260
    %v262 = vpop.f32.mrf.mxu0
    %v263 = vadd.f32 %v181, %v262
    %264 = vmatmul.bf16.gmra.mxu0 %v160
    %v265 = vpop.f32.mrf.mxu0
    %v266 = vadd.f32 %v181, %v265
    %v267 = vpop.f32.mrf.mxu0
    %v268 = vadd.f32 %v181, %v267
    %269 = vmatmul.bf16.gmra.mxu0 %v161
    %v270 = vpop.f32.mrf.mxu0
    %v271 = vadd.f32 %v181, %v270
    %v272 = vpop.f32.mrf.mxu0
    %v273 = vadd.f32 %v181, %v272
    %274 = vmatmul.bf16.gmra.mxu0 %v162
    %v275 = vpop.f32.mrf.mxu0
    %v276 = vadd.f32 %v181, %v275
    %v277 = vpop.f32.mrf.mxu0
    %v278 = vadd.f32 %v181, %v277
    %279 = vdwg.mxu0
    %v280 = vmax.f32 %v241, 0.0
    %v281 = vmax.f32 %v243, 0.0
    %v282 = vmax.f32 %v246, 0.0
    %v283 = vmax.f32 %v248, 0.0
    %v284 = vmax.f32 %v251, 0.0
    %v285 = vmax.f32 %v253, 0.0
    %v286 = vmax.f32 %v256, 0.0
    %v287 = vmax.f32 %v258, 0.0
    %v288 = vmax.f32 %v261, 0.0
    %v289 = vmax.f32 %v263, 0.0
    %v290 = vmax.f32 %v266, 0.0
    %v291 = vmax.f32 %v268, 0.0
    %v292 = vmax.f32 %v271, 0.0
    %v293 = vmax.f32 %v273, 0.0
    %v294 = vmax.f32 %v276, 0.0
    %v295 = vmax.f32 %v278, 0.0
    %v296 = vld [vmem:[%s5] sm:$0x1]
    %v297 = vunpack.c.l.bf16 %v296
    %v298 = vperm.slane %v297, 0
    %v299 = vmul.f32 %v280, %v298
    %v300 = vmul.f32 %v281, %v298
    %v301 = vmul.f32 %v282, %v298
    %v302 = vmul.f32 %v283, %v298
    %v303 = vmul.f32 %v284, %v298
    %v304 = vmul.f32 %v285, %v298
    %v305 = vmul.f32 %v286, %v298
    %v306 = vmul.f32 %v287, %v298
    %v307 = vmul.f32 %v288, %v298
    %v308 = vmul.f32 %v289, %v298
    %v309 = vmul.f32 %v290, %v298
    %v310 = vmul.f32 %v291, %v298
    %v311 = vmul.f32 %v292, %v298
    %v312 = vmul.f32 %v293, %v298
    %v313 = vmul.f32 %v294, %v298
    %v314 = vmul.f32 %v295, %v298
    %315 = vadd.xlane.f32.xlu0 %v299
    %v316 = vpop.xlane.xlu0 %315
    %317 = vadd.xlane.f32.xlu0 %v300
    %v318 = vpop.xlane.xlu0 %317
    %319 = vadd.xlane.f32.xlu0 %v301
    %v320 = vpop.xlane.xlu0 %319
    %321 = vadd.xlane.f32.xlu0 %v302
    %v322 = vpop.xlane.xlu0 %321
    %323 = vadd.xlane.f32.xlu0 %v303
    %v324 = vpop.xlane.xlu0 %323
    %325 = vadd.xlane.f32.xlu0 %v304
    %v326 = vpop.xlane.xlu0 %325
    %327 = vadd.xlane.f32.xlu0 %v305
    %v328 = vpop.xlane.xlu0 %327
    %329 = vadd.xlane.f32.xlu0 %v306
    %v330 = vpop.xlane.xlu0 %329
    %331 = vadd.xlane.f32.xlu0 %v307
    %v332 = vpop.xlane.xlu0 %331
    %333 = vadd.xlane.f32.xlu0 %v308
    %v334 = vpop.xlane.xlu0 %333
    %335 = vadd.xlane.f32.xlu0 %v309
    %v336 = vpop.xlane.xlu0 %335
    %337 = vadd.xlane.f32.xlu0 %v310
    %v338 = vpop.xlane.xlu0 %337
    %339 = vadd.xlane.f32.xlu0 %v311
    %v340 = vpop.xlane.xlu0 %339
    %341 = vadd.xlane.f32.xlu0 %v312
    %v342 = vpop.xlane.xlu0 %341
    %343 = vadd.xlane.f32.xlu0 %v313
    %v344 = vpop.xlane.xlu0 %343
    %345 = vadd.xlane.f32.xlu0 %v314
    %v346 = vpop.xlane.xlu0 %345
    %s347 = sld [smem:[#allocation2]]
    %v348 = vstv %s347
    %v349 = vadd.f32 %v316, %v348
    %v350 = vadd.f32 %v318, %v348
    %v351 = vadd.f32 %v320, %v348
    %v352 = vadd.f32 %v322, %v348
    %v353 = vadd.f32 %v324, %v348
    %v354 = vadd.f32 %v326, %v348
    %v355 = vadd.f32 %v328, %v348
    %v356 = vadd.f32 %v330, %v348
    %v357 = vadd.f32 %v332, %v348
    %v358 = vadd.f32 %v334, %v348
    %v359 = vadd.f32 %v336, %v348
    %v360 = vadd.f32 %v338, %v348
    %v361 = vadd.f32 %v340, %v348
    %v362 = vadd.f32 %v342, %v348
    %v363 = vadd.f32 %v344, %v348
    %v364 = vadd.f32 %v346, %v348
    %v381 = vlaneseq
    %v382 = vand.u32 %v381, 127
    %v383 = vperm.slane %v349, %v382
    %v384 = vadd.s32 %v382, 4294967288
    %v385 = vperm.slane %v350, %v384
    %vm386 = vcmask 130112
    %v387 = vsel %vm386, %v385, %v383
    %v388 = vadd.s32 %v382, 4294967280
    %v389 = vperm.slane %v351, %v388
    %vm390 = vcmask 195712
    %v391 = vsel %vm390, %v389, %v387
    %v392 = vadd.s32 %v382, 4294967272
    %v393 = vperm.slane %v352, %v392
    %vm394 = vcmask 261312
    %v395 = vsel %vm394, %v393, %v391
    %v396 = vadd.s32 %v382, 4294967264
    %v397 = vperm.slane %v353, %v396
    %vm398 = vcmask 326912
    %v399 = vsel %vm398, %v397, %v395
    %v400 = vadd.s32 %v382, 4294967256
    %v401 = vperm.slane %v354, %v400
    %vm402 = vcmask 392512
    %v403 = vsel %vm402, %v401, %v399
    %v404 = vadd.s32 %v382, 4294967248
    %v405 = vperm.slane %v355, %v404
    %vm406 = vcmask 458112
    %v407 = vsel %vm406, %v405, %v403
    %v408 = vadd.s32 %v382, 4294967240
    %v409 = vperm.slane %v356, %v408
    %vm410 = vcmask 523712
    %v411 = vsel %vm410, %v409, %v407
    %v412 = vadd.s32 %v382, 4294967232
    %v413 = vperm.slane %v357, %v412
    %vm414 = vcmask 589312
    %v415 = vsel %vm414, %v413, %v411
    %v416 = vadd.s32 %v382, 4294967224
    %v417 = vperm.slane %v358, %v416
    %vm418 = vcmask 654912
    %v419 = vsel %vm418, %v417, %v415
    %v420 = vadd.s32 %v382, 4294967216
    %v421 = vperm.slane %v359, %v420
    %vm422 = vcmask 720512
    %v423 = vsel %vm422, %v421, %v419
    %v424 = vadd.s32 %v382, 4294967208
    %v425 = vperm.slane %v360, %v424
    %vm426 = vcmask 786112
    %v427 = vsel %vm426, %v425, %v423
    %v428 = vadd.s32 %v382, 4294967200
    %v429 = vperm.slane %v361, %v428
    %vm430 = vcmask 851712
    %v431 = vsel %vm430, %v429, %v427
    %v432 = vadd.s32 %v382, 4294967192
    %v433 = vperm.slane %v362, %v432
    %vm434 = vcmask 917312
    %v435 = vsel %vm434, %v433, %v431
    %v436 = vadd.s32 %v382, 4294967184
    %v437 = vperm.slane %v363, %v436
    %vm438 = vcmask 982912
    %v439 = vsel %vm438, %v437, %v435
    %v440 = vadd.s32 %v382, 4294967176
    %v441 = vperm.slane %v364, %v440
    %vm442 = vcmask 1048512
    %v443 = vsel %vm442, %v441, %v439
    %445 = vst [vmem:[#allocation3] sm:$0x1] %v443
    // Predicated region
    $region30: #{tpu_custom_call.1} parent=1 // pred_check
      _
    $region31: #{tpu_custom_call.1} parent=1 // pred_check_branch
      %447 = sbr.rel (0) target = $region33
    $region32: #{tpu_custom_call.1} parent=1 // pred_region
      %449 = vsyncadd [#allocation4], 0
      %s451 = sshll.u32 [#allocation3], 4
      %s452 = int_to_ptr.vmem [resolvable:$true] %s451
      %s453 = sshll.u32 %s7, 4
      %s454 = int_to_ptr.hbm [resolvable:$true] %s453
      %456 = dma.vmem_to_hbm [thread:$0]  %s452, 16, %s454, [#allocation4]
    $region33: #{tpu_custom_call.1} parent=1 // pred_fallthru
      _
    // Predicated region
    $region34: #{tpu_custom_call.1} parent=1 // pred_check
      _
    $region35: #{tpu_custom_call.1} parent=1 // pred_check_branch
      %458 = sbr.rel (0) target = $region37
    $region36: #{tpu_custom_call.1} parent=1 // pred_region
      %460 = dma.done [#allocation4], 16
    $region37: #{tpu_custom_call.1} parent=1 // pred_fallthru
      _
    %461 = vsyncpa [#allocation4], 1

// kernel: tpu_custom_call.1
$region0: #{tpu_custom_call.1}
  #allocation0 [shape = 'u32[]', space=smem, size = 0x4, offset = 0x4, fixed_abs, tag = 'smem constant byte address 0x4 - core index']
  #allocation1 [shape = 'u32[72,128]{1,0:T(1,128)}', space=vmem, size = 0x9000, scoped, tag = 'internal scratch']
  #allocation2 [shape = 'f32[1,1]{1,0:T(1,128)S(6)}', space=smem, size = 0x200, scoped, tag = 'scoped memory for tpu_custom_call.1']
  %s0 = inlined_call_operand.vmem [shape: f32[128,16], index: 0, kind: input, shape index: {}]
  %s1 = inlined_call_operand.vmem [shape: bf16[16,128], index: 1, kind: input, shape index: {}]
  %s2 = inlined_call_operand.vmem [shape: f32[1,128], index: 2, kind: input, shape index: {}]
  %s3 = inlined_call_operand.vmem [shape: bf16[128,128], index: 3, kind: input, shape index: {}]
  %s4 = inlined_call_operand.vmem [shape: f32[1,128], index: 4, kind: input, shape index: {}]
  %s5 = inlined_call_operand.vmem [shape: bf16[1,128], index: 5, kind: input, shape index: {}]
  %s6 = inlined_call_operand.<no memory space> [shape: f32[1,1], index: 6, kind: input, shape index: {}]
  %s7 = inlined_call_operand.hbm [shape: f32[1,128], index: 7, kind: output, shape index: {}]
  %s8 = sld [smem:[#allocation0]]
  $region38: #{tpu_custom_call.1} parent=0
    _
  %s10 = ssub.s32 1, %s8
  %s11 = scalar_select 0, %s10, %s8
  %12 = sst [smem:[#allocation2]] %s6
  $region1: #{tpu_custom_call.1} parent=0
    #allocation3 [shape = 'u8[512]{0}', space=vmem, size = 0x400, scoped, tag = 'output window, operand 0, single buffered']
    #allocation4 [shape = 's32[1]{0}', space=sflag, size = 0x4, scoped, tag = 'scoped memory for tpu_custom_call.1']
    %13 = vsyncpa [#allocation4], 0
    // Predicated region
    $region2: #{tpu_custom_call.1} parent=1 // pred_check
      _
    $region3: #{tpu_custom_call.1} parent=1 // pred_check_branch
      %15 = sbr.rel (0) target = $region5
    $region4: #{tpu_custom_call.1} parent=1 // pred_region
      _
    $region5: #{tpu_custom_call.1} parent=1 // pred_fallthru
      _
    // Predicated region
    $region6: #{tpu_custom_call.1} parent=1 // pred_check
      _
    $region7: #{tpu_custom_call.1} parent=1 // pred_check_branch
      %17 = sbr.rel (0) target = $region9
    $region8: #{tpu_custom_call.1} parent=1 // pred_region
      _
    $region9: #{tpu_custom_call.1} parent=1 // pred_fallthru
      _
    // Predicated region
    $region10: #{tpu_custom_call.1} parent=1 // pred_check
      _
    $region11: #{tpu_custom_call.1} parent=1 // pred_check_branch
      %19 = sbr.rel (0) target = $region13
    $region12: #{tpu_custom_call.1} parent=1 // pred_region
      _
    $region13: #{tpu_custom_call.1} parent=1 // pred_fallthru
      _
    // Predicated region
    $region14: #{tpu_custom_call.1} parent=1 // pred_check
      _
    $region15: #{tpu_custom_call.1} parent=1 // pred_check_branch
      %21 = sbr.rel (0) target = $region17
    $region16: #{tpu_custom_call.1} parent=1 // pred_region
      _
    $region17: #{tpu_custom_call.1} parent=1 // pred_fallthru
      _
    // Predicated region
    $region18: #{tpu_custom_call.1} parent=1 // pred_check
      _
    $region19: #{tpu_custom_call.1} parent=1 // pred_check_branch
      %23 = sbr.rel (0) target = $region21
    $region20: #{tpu_custom_call.1} parent=1 // pred_region
      _
    $region21: #{tpu_custom_call.1} parent=1 // pred_fallthru
      _
    // Predicated region
    $region22: #{tpu_custom_call.1} parent=1 // pred_check
      _
    $region23: #{tpu_custom_call.1} parent=1 // pred_check_branch
      %25 = sbr.rel (0) target = $region25
    $region24: #{tpu_custom_call.1} parent=1 // pred_region
      _
    $region25: #{tpu_custom_call.1} parent=1 // pred_fallthru
      _
    // Predicated region
    $region26: #{tpu_custom_call.1} parent=1 // pred_check
      _
    $region27: #{tpu_custom_call.1} parent=1 // pred_check_branch
      %27 = sbr.rel (0) target = $region29
    $region28: #{tpu_custom_call.1} parent=1 // pred_region
      _
    $region29: #{tpu_custom_call.1} parent=1 // pred_fallthru
      _
    %v29 = vld [vmem:[%s0] sm:$0xff]
    %v30 = vld [vmem:[%s0 + $0x8] sm:$0xff]
    %v31 = vld [vmem:[%s0 + $0x10] sm:$0xff]
    %v32 = vld [vmem:[%s0 + $0x18] sm:$0xff]
    %v33 = vld [vmem:[%s0 + $0x20] sm:$0xff]
    %v34 = vld [vmem:[%s0 + $0x28] sm:$0xff]
    %v35 = vld [vmem:[%s0 + $0x30] sm:$0xff]
    %v36 = vld [vmem:[%s0 + $0x38] sm:$0xff]
    %v37 = vld [vmem:[%s0 + $0x40] sm:$0xff]
    %v38 = vld [vmem:[%s0 + $0x48] sm:$0xff]
    %v39 = vld [vmem:[%s0 + $0x50] sm:$0xff]
    %v40 = vld [vmem:[%s0 + $0x58] sm:$0xff]
    %v41 = vld [vmem:[%s0 + $0x60] sm:$0xff]
    %v42 = vld [vmem:[%s0 + $0x68] sm:$0xff]
    %v43 = vld [vmem:[%s0 + $0x70] sm:$0xff]
    %v44 = vld [vmem:[%s0 + $0x78] sm:$0xff]
    %v45 = vpack.c.bf16 %v30, %v29
    %v46 = vpack.c.bf16 %v32, %v31
    %v47 = vpack.c.bf16 %v34, %v33
    %v48 = vpack.c.bf16 %v36, %v35
    %v49 = vpack.c.bf16 %v38, %v37
    %v50 = vpack.c.bf16 %v40, %v39
    %v51 = vpack.c.bf16 %v42, %v41
    %v52 = vpack.c.bf16 %v44, %v43
    %v53 = vld [vmem:[%s1] sm:$0xf]
    %v54 = vld [vmem:[%s1 + $0x4] sm:$0xf]
    %v55 = vld [vmem:[%s2] sm:$0x1]
    %v57 = vperm.slane %v55, 0
    %v61 = vunpack.c.l.b16 %v53
    %v62 = vunpack.c.l.b16 %v54
    %v63 = vpack.c.b16 %v62, %v61
    %vm65 = vcmask 130048
    %v67 = vsel %vm65, %v45, 0
    %v70 = vsel %vm65, %v46, 0
    %v73 = vsel %vm65, %v47, 0
    %v76 = vsel %vm65, %v48, 0
    %v79 = vsel %vm65, %v49, 0
    %v82 = vsel %vm65, %v50, 0
    %v85 = vsel %vm65, %v51, 0
    %v88 = vsel %vm65, %v52, 0
    %90 = vmatpush.bf16.msra.mxu0 0
    %91 = vmatpush.bf16.msra.mxu0 0
    %92 = vmatpush.bf16.msra.mxu0 0
    %93 = vmatpush.bf16.msra.mxu0 0
    %94 = vmatpush.bf16.msra.mxu0 0
    %95 = vmatpush.bf16.msra.mxu0 0
    %96 = vmatpush.bf16.msra.mxu0 0
    %97 = vmatpush.bf16.msra.mxu0 %v63
    %98 = vmatmul.bf16.gmra.mxu0 %v67
    %v99 = vpop.f32.mrf.mxu0
    %v100 = vadd.f32 %v57, %v99
    %v101 = vpop.f32.mrf.mxu0
    %v102 = vadd.f32 %v57, %v101
    %103 = vmatmul.bf16.gmra.mxu0 %v70
    %v104 = vpop.f32.mrf.mxu0
    %v105 = vadd.f32 %v57, %v104
    %v106 = vpop.f32.mrf.mxu0
    %v107 = vadd.f32 %v57, %v106
    %108 = vmatmul.bf16.gmra.mxu0 %v73
    %v109 = vpop.f32.mrf.mxu0
    %v110 = vadd.f32 %v57, %v109
    %v111 = vpop.f32.mrf.mxu0
    %v112 = vadd.f32 %v57, %v111
    %113 = vmatmul.bf16.gmra.mxu0 %v76
    %v114 = vpop.f32.mrf.mxu0
    %v115 = vadd.f32 %v57, %v114
    %v116 = vpop.f32.mrf.mxu0
    %v117 = vadd.f32 %v57, %v116
    %118 = vmatmul.bf16.gmra.mxu0 %v79
    %v119 = vpop.f32.mrf.mxu0
    %v120 = vadd.f32 %v57, %v119
    %v121 = vpop.f32.mrf.mxu0
    %v122 = vadd.f32 %v57, %v121
    %123 = vmatmul.bf16.gmra.mxu0 %v82
    %v124 = vpop.f32.mrf.mxu0
    %v125 = vadd.f32 %v57, %v124
    %v126 = vpop.f32.mrf.mxu0
    %v127 = vadd.f32 %v57, %v126
    %128 = vmatmul.bf16.gmra.mxu0 %v85
    %v129 = vpop.f32.mrf.mxu0
    %v130 = vadd.f32 %v57, %v129
    %v131 = vpop.f32.mrf.mxu0
    %v132 = vadd.f32 %v57, %v131
    %133 = vmatmul.bf16.gmra.mxu0 %v88
    %v134 = vpop.f32.mrf.mxu0
    %v135 = vadd.f32 %v57, %v134
    %v136 = vpop.f32.mrf.mxu0
    %v137 = vadd.f32 %v57, %v136
    %138 = vdwg.mxu0
    %v139 = vmax.f32 %v100, 0.0
    %v140 = vmax.f32 %v102, 0.0
    %v141 = vmax.f32 %v105, 0.0
    %v142 = vmax.f32 %v107, 0.0
    %v143 = vmax.f32 %v110, 0.0
    %v144 = vmax.f32 %v112, 0.0
    %v145 = vmax.f32 %v115, 0.0
    %v146 = vmax.f32 %v117, 0.0
    %v147 = vmax.f32 %v120, 0.0
    %v148 = vmax.f32 %v122, 0.0
    %v149 = vmax.f32 %v125, 0.0
    %v150 = vmax.f32 %v127, 0.0
    %v151 = vmax.f32 %v130, 0.0
    %v152 = vmax.f32 %v132, 0.0
    %v153 = vmax.f32 %v135, 0.0
    %v154 = vmax.f32 %v137, 0.0
    %v155 = vpack.c.bf16 %v140, %v139
    %v156 = vpack.c.bf16 %v142, %v141
    %v157 = vpack.c.bf16 %v144, %v143
    %v158 = vpack.c.bf16 %v146, %v145
    %v159 = vpack.c.bf16 %v148, %v147
    %v160 = vpack.c.bf16 %v150, %v149
    %v161 = vpack.c.bf16 %v152, %v151
    %v162 = vpack.c.bf16 %v154, %v153
    %v163 = vld [vmem:[%s3] sm:$0xf]
    %v164 = vld [vmem:[%s3 + $0x4] sm:$0xf]
    %v165 = vld [vmem:[%s3 + $0x8] sm:$0xf]
    %v166 = vld [vmem:[%s3 + $0xc] sm:$0xf]
    %v167 = vld [vmem:[%s3 + $0x10] sm:$0xf]
    %v168 = vld [vmem:[%s3 + $0x14] sm:$0xf]
    %v169 = vld [vmem:[%s3 + $0x18] sm:$0xf]
    %v170 = vld [vmem:[%s3 + $0x1c] sm:$0xf]
    %v171 = vld [vmem:[%s3 + $0x20] sm:$0xf]
    %v172 = vld [vmem:[%s3 + $0x24] sm:$0xf]
    %v173 = vld [vmem:[%s3 + $0x28] sm:$0xf]
    %v174 = vld [vmem:[%s3 + $0x2c] sm:$0xf]
    %v175 = vld [vmem:[%s3 + $0x30] sm:$0xf]
    %v176 = vld [vmem:[%s3 + $0x34] sm:$0xf]
    %v177 = vld [vmem:[%s3 + $0x38] sm:$0xf]
    %v178 = vld [vmem:[%s3 + $0x3c] sm:$0xf]
    %v179 = vld [vmem:[%s4] sm:$0x1]
    %v181 = vperm.slane %v179, 0
    %v199 = vunpack.c.l.b16 %v163
    %v200 = vunpack.c.l.b16 %v164
    %v201 = vunpack.c.l.b16 %v165
    %v202 = vunpack.c.l.b16 %v166
    %v203 = vunpack.c.l.b16 %v167
    %v204 = vunpack.c.l.b16 %v168
    %v205 = vunpack.c.l.b16 %v169
    %v206 = vunpack.c.l.b16 %v170
    %v207 = vunpack.c.l.b16 %v171
    %v208 = vunpack.c.l.b16 %v172
    %v209 = vunpack.c.l.b16 %v173
    %v210 = vunpack.c.l.b16 %v174
    %v211 = vunpack.c.l.b16 %v175
    %v212 = vunpack.c.l.b16 %v176
    %v213 = vunpack.c.l.b16 %v177
    %v214 = vunpack.c.l.b16 %v178
    %v215 = vpack.c.b16 %v200, %v199
    %v216 = vpack.c.b16 %v202, %v201
    %v217 = vpack.c.b16 %v204, %v203
    %v218 = vpack.c.b16 %v206, %v205
    %v219 = vpack.c.b16 %v208, %v207
    %v220 = vpack.c.b16 %v210, %v209
    %v221 = vpack.c.b16 %v212, %v211
    %v222 = vpack.c.b16 %v214, %v213
    %231 = vmatpush.bf16.msra.mxu0 %v222
    %232 = vmatpush.bf16.msra.mxu0 %v221
    %233 = vmatpush.bf16.msra.mxu0 %v220
    %234 = vmatpush.bf16.msra.mxu0 %v219
    %235 = vmatpush.bf16.msra.mxu0 %v218
    %236 = vmatpush.bf16.msra.mxu0 %v217
    %237 = vmatpush.bf16.msra.mxu0 %v216
    %238 = vmatpush.bf16.msra.mxu0 %v215
    %239 = vmatmul.bf16.gmra.mxu0 %v155
    %v240 = vpop.f32.mrf.mxu0
    %v241 = vadd.f32 %v181, %v240
    %v242 = vpop.f32.mrf.mxu0
    %v243 = vadd.f32 %v181, %v242
    %244 = vmatmul.bf16.gmra.mxu0 %v156
    %v245 = vpop.f32.mrf.mxu0
    %v246 = vadd.f32 %v181, %v245
    %v247 = vpop.f32.mrf.mxu0
    %v248 = vadd.f32 %v181, %v247
    %249 = vmatmul.bf16.gmra.mxu0 %v157
    %v250 = vpop.f32.mrf.mxu0
    %v251 = vadd.f32 %v181, %v250
    %v252 = vpop.f32.mrf.mxu0
    %v253 = vadd.f32 %v181, %v252
    %254 = vmatmul.bf16.gmra.mxu0 %v158
    %v255 = vpop.f32.mrf.mxu0
    %v256 = vadd.f32 %v181, %v255
    %v257 = vpop.f32.mrf.mxu0
    %v258 = vadd.f32 %v181, %v257
    %259 = vmatmul.bf16.gmra.mxu0 %v159
    %v260 = vpop.f32.mrf.mxu0
    %v261 = vadd.f32 %v181, %v260
    %v262 = vpop.f32.mrf.mxu0
    %v263 = vadd.f32 %v181, %v262
    %264 = vmatmul.bf16.gmra.mxu0 %v160
    %v265 = vpop.f32.mrf.mxu0
    %v266 = vadd.f32 %v181, %v265
    %v267 = vpop.f32.mrf.mxu0
    %v268 = vadd.f32 %v181, %v267
    %269 = vmatmul.bf16.gmra.mxu0 %v161
    %v270 = vpop.f32.mrf.mxu0
    %v271 = vadd.f32 %v181, %v270
    %v272 = vpop.f32.mrf.mxu0
    %v273 = vadd.f32 %v181, %v272
    %274 = vmatmul.bf16.gmra.mxu0 %v162
    %v275 = vpop.f32.mrf.mxu0
    %v276 = vadd.f32 %v181, %v275
    %v277 = vpop.f32.mrf.mxu0
    %v278 = vadd.f32 %v181, %v277
    %279 = vdwg.mxu0
    %v280 = vmax.f32 %v241, 0.0
    %v281 = vmax.f32 %v243, 0.0
    %v282 = vmax.f32 %v246, 0.0
    %v283 = vmax.f32 %v248, 0.0
    %v284 = vmax.f32 %v251, 0.0
    %v285 = vmax.f32 %v253, 0.0
    %v286 = vmax.f32 %v256, 0.0
    %v287 = vmax.f32 %v258, 0.0
    %v288 = vmax.f32 %v261, 0.0
    %v289 = vmax.f32 %v263, 0.0
    %v290 = vmax.f32 %v266, 0.0
    %v291 = vmax.f32 %v268, 0.0
    %v292 = vmax.f32 %v271, 0.0
    %v293 = vmax.f32 %v273, 0.0
    %v294 = vmax.f32 %v276, 0.0
    %v295 = vmax.f32 %v278, 0.0
    %v296 = vld [vmem:[%s5] sm:$0x1]
    %v297 = vunpack.c.l.bf16 %v296
    %v298 = vperm.slane %v297, 0
    %v299 = vmul.f32 %v280, %v298
    %v300 = vmul.f32 %v281, %v298
    %v301 = vmul.f32 %v282, %v298
    %v302 = vmul.f32 %v283, %v298
    %v303 = vmul.f32 %v284, %v298
    %v304 = vmul.f32 %v285, %v298
    %v305 = vmul.f32 %v286, %v298
    %v306 = vmul.f32 %v287, %v298
    %v307 = vmul.f32 %v288, %v298
    %v308 = vmul.f32 %v289, %v298
    %v309 = vmul.f32 %v290, %v298
    %v310 = vmul.f32 %v291, %v298
    %v311 = vmul.f32 %v292, %v298
    %v312 = vmul.f32 %v293, %v298
    %v313 = vmul.f32 %v294, %v298
    %v314 = vmul.f32 %v295, %v298
    %315 = vadd.xlane.f32.xlu0 %v299
    %v316 = vpop.xlane.xlu0 %315
    %317 = vadd.xlane.f32.xlu0 %v300
    %v318 = vpop.xlane.xlu0 %317
    %319 = vadd.xlane.f32.xlu0 %v301
    %v320 = vpop.xlane.xlu0 %319
    %321 = vadd.xlane.f32.xlu0 %v302
    %v322 = vpop.xlane.xlu0 %321
    %323 = vadd.xlane.f32.xlu0 %v303
    %v324 = vpop.xlane.xlu0 %323
    %325 = vadd.xlane.f32.xlu0 %v304
    %v326 = vpop.xlane.xlu0 %325
    %327 = vadd.xlane.f32.xlu0 %v305
    %v328 = vpop.xlane.xlu0 %327
    %329 = vadd.xlane.f32.xlu0 %v306
    %v330 = vpop.xlane.xlu0 %329
    %331 = vadd.xlane.f32.xlu0 %v307
    %v332 = vpop.xlane.xlu0 %331
    %333 = vadd.xlane.f32.xlu0 %v308
    %v334 = vpop.xlane.xlu0 %333
    %335 = vadd.xlane.f32.xlu0 %v309
    %v336 = vpop.xlane.xlu0 %335
    %337 = vadd.xlane.f32.xlu0 %v310
    %v338 = vpop.xlane.xlu0 %337
    %339 = vadd.xlane.f32.xlu0 %v311
    %v340 = vpop.xlane.xlu0 %339
    %341 = vadd.xlane.f32.xlu0 %v312
    %v342 = vpop.xlane.xlu0 %341
    %343 = vadd.xlane.f32.xlu0 %v313
    %v344 = vpop.xlane.xlu0 %343
    %345 = vadd.xlane.f32.xlu0 %v314
    %v346 = vpop.xlane.xlu0 %345
    %s347 = sld [smem:[#allocation2]]
    %v348 = vstv %s347
    %v349 = vadd.f32 %v316, %v348
    %v350 = vadd.f32 %v318, %v348
    %v351 = vadd.f32 %v320, %v348
    %v352 = vadd.f32 %v322, %v348
    %v353 = vadd.f32 %v324, %v348
    %v354 = vadd.f32 %v326, %v348
    %v355 = vadd.f32 %v328, %v348
    %v356 = vadd.f32 %v330, %v348
    %v357 = vadd.f32 %v332, %v348
    %v358 = vadd.f32 %v334, %v348
    %v359 = vadd.f32 %v336, %v348
    %v360 = vadd.f32 %v338, %v348
    %v361 = vadd.f32 %v340, %v348
    %v362 = vadd.f32 %v342, %v348
    %v363 = vadd.f32 %v344, %v348
    %v364 = vadd.f32 %v346, %v348
    %v381 = vlaneseq
    %v382 = vand.u32 %v381, 127
    %v383 = vperm.slane %v349, %v382
    %v384 = vadd.s32 %v382, 4294967288
    %v385 = vperm.slane %v350, %v384
    %vm386 = vcmask 130112
    %v387 = vsel %vm386, %v385, %v383
    %v388 = vadd.s32 %v382, 4294967280
    %v389 = vperm.slane %v351, %v388
    %vm390 = vcmask 195712
    %v391 = vsel %vm390, %v389, %v387
    %v392 = vadd.s32 %v382, 4294967272
    %v393 = vperm.slane %v352, %v392
    %vm394 = vcmask 261312
    %v395 = vsel %vm394, %v393, %v391
    %v396 = vadd.s32 %v382, 4294967264
    %v397 = vperm.slane %v353, %v396
    %vm398 = vcmask 326912
    %v399 = vsel %vm398, %v397, %v395
    %v400 = vadd.s32 %v382, 4294967256
    %v401 = vperm.slane %v354, %v400
    %vm402 = vcmask 392512
    %v403 = vsel %vm402, %v401, %v399
    %v404 = vadd.s32 %v382, 4294967248
    %v405 = vperm.slane %v355, %v404
    %vm406 = vcmask 458112
    %v407 = vsel %vm406, %v405, %v403
    %v408 = vadd.s32 %v382, 4294967240
    %v409 = vperm.slane %v356, %v408
    %vm410 = vcmask 523712
    %v411 = vsel %vm410, %v409, %v407
    %v412 = vadd.s32 %v382, 4294967232
    %v413 = vperm.slane %v357, %v412
    %vm414 = vcmask 589312
    %v415 = vsel %vm414, %v413, %v411
    %v416 = vadd.s32 %v382, 4294967224
    %v417 = vperm.slane %v358, %v416
    %vm418 = vcmask 654912
    %v419 = vsel %vm418, %v417, %v415
    %v420 = vadd.s32 %v382, 4294967216
    %v421 = vperm.slane %v359, %v420
    %vm422 = vcmask 720512
    %v423 = vsel %vm422, %v421, %v419
    %v424 = vadd.s32 %v382, 4294967208
    %v425 = vperm.slane %v360, %v424
    %vm426 = vcmask 786112
    %v427 = vsel %vm426, %v425, %v423
    %v428 = vadd.s32 %v382, 4294967200
    %v429 = vperm.slane %v361, %v428
    %vm430 = vcmask 851712
    %v431 = vsel %vm430, %v429, %v427
    %v432 = vadd.s32 %v382, 4294967192
    %v433 = vperm.slane %v362, %v432
    %vm434 = vcmask 917312
    %v435 = vsel %vm434, %v433, %v431
    %v436 = vadd.s32 %v382, 4294967184
    %v437 = vperm.slane %v363, %v436
    %vm438 = vcmask 982912
    %v439 = vsel %vm438, %v437, %v435
    %v440 = vadd.s32 %v382, 4294967176
    %v441 = vperm.slane %v364, %v440
    %vm442 = vcmask 1048512
    %v443 = vsel %vm442, %v441, %v439
    %445 = vst [vmem:[#allocation3] sm:$0x1] %v443
    // Predicated region
    $region30: #{tpu_custom_call.1} parent=1 // pred_check
      _
    $region31: #{tpu_custom_call.1} parent=1 // pred_check_branch
      %447 = sbr.rel (0) target = $region33
    $region32: #{tpu_custom_call.1} parent=1 // pred_region
      %449 = vsyncadd [#allocation4], 0
      %s451 = sshll.u32 [#allocation3], 4
      %s452 = int_to_ptr.vmem [resolvable:$true] %s451
      %s453 = sshll.u32 %s7, 4
      %s454 = int_to_ptr.hbm [resolvable:$true] %s453
      %456 = dma.vmem_to_hbm [thread:$0]  %s452, 16, %s454, [#allocation4]
    $region33: #{tpu_custom_call.1} parent=1 // pred_fallthru
      _
    // Predicated region
    $region34: #{tpu_custom_call.1} parent=1 // pred_check
      _
    $region35: #{tpu_custom_call.1} parent=1 // pred_check_branch
      %458 = sbr.rel (0) target = $region37
    $region36: #{tpu_custom_call.1} parent=1 // pred_region
      %460 = dma.done [#allocation4], 16
    $region37: #{tpu_custom_call.1} parent=1 // pred_fallthru
      _
    %461 = vsyncpa [#allocation4], 1

</llo_original>
